<compile_context>
chip_gen: v5e
topology: v5e:2x2
jax: 0.10.0
libtpu: 0.0.40
codegen_flags: <defaults>
</compile_context>

<pallas_src>
import functools

import jax
import jax.numpy as jnp
from jax.experimental import pallas as pl
from jax.experimental.pallas import tpu as pltpu


def _round_up(x, m):
    return ((x + m - 1) // m) * m


def _cdiv(a, b):
    return (a + b - 1) // b


# ----------------------------- Pallas kernel ------------------------------- #
def _disc_kernel(ids_ref, user_ref, w1_ref, b1_ref, w2_ref, b2_ref,
                 w3_ref, b3_ref, out_ref, *, matmul_dtype):
    ids = ids_ref[...]                          # [TB, attrNum] int32
    tb, attr_num = ids.shape
    two_n = 2 * attr_num
    one_hot_dim = attr_num * two_n

    # Flat one-hot via full-width compares (no narrow-slice lane concat):
    # column j of the flat one-hot <-> (attribute j // 2N, value j % 2N),
    # so attribute a lights column a*2N + ids[:, a].  Ranges are disjoint,
    # so accumulation by add == OR.
    col = jax.lax.broadcasted_iota(jnp.int32, (tb, one_hot_dim), 1)
    onehot = jnp.zeros((tb, one_hot_dim), jnp.float32)
    for a in range(attr_num):
        onehot = onehot + (col == ids[:, a:a + 1] + a * two_n).astype(jnp.float32)

    # Single fused layer-1 matmul: [onehot | userEmb] @ [M1 ; W1_user]
    act = jnp.concatenate([onehot.astype(matmul_dtype), user_ref[...]], axis=-1)
    h1 = jnp.tanh(jnp.dot(act, w1_ref[...],
                          preferred_element_type=jnp.float32) + b1_ref[...])
    h2 = jnp.tanh(jnp.dot(h1.astype(matmul_dtype), w2_ref[...],
                          preferred_element_type=jnp.float32) + b2_ref[...])
    res = jnp.dot(h2.astype(matmul_dtype), w3_ref[...],
                  preferred_element_type=jnp.float32) + b3_ref[...]

    # sigmoid(x) = 0.5 * tanh(x/2) + 0.5  (one EUP push, exact)
    prob = 0.5 * jnp.tanh(0.5 * res) + 0.5

    # One lane-dense (multiple-of-128) unmasked store: [res | prob | 0-pad]
    out = jnp.concatenate([res, prob], axis=-1)
    pad = out_ref.shape[-1] - out.shape[-1]
    if pad:
        out = jnp.concatenate([out, jnp.zeros((tb, pad), jnp.float32)], axis=-1)
    out_ref[...] = out


# -------------------------- parameter preparation --------------------------- #
def prepare_kernel_params(params, attrNum, attrPresentDim, userEmbDim, hiddenDim,
                          use_bf16=False):
    """One-time conversion of torch-layout params into kernel-ready tensors.

    nn.Linear stores W as [out, in]; the kernel wants [in, out].  The embedding
    table is folded into layer 1's feature block (one-hot matmul == gather),
    and the feature / user halves of layer 1 are stacked into ONE weight.
    """
    featDim = attrNum * attrPresentDim
    mm_dtype = jnp.bfloat16 if use_bf16 else jnp.float32

    w1_t = params["w1"].T                                    # [featDim+U, H]
    w1_feat = w1_t[:featDim].reshape(attrNum, attrPresentDim, hiddenDim)
    # M1[a*2N + v, h] = sum_d table[v, d] * W1_feat[a, d, h]
    m1 = jnp.einsum("vd,adh->avh", params["disAttrMat"], w1_feat,
                    precision=jax.lax.Precision.HIGHEST)
    m1 = m1.reshape(attrNum * 2 * attrNum, hiddenDim)
    w1_full = jnp.concatenate([m1, w1_t[featDim:]], axis=0)  # [oneHot+U, H]

    return {
        "w1": jnp.asarray(w1_full, mm_dtype),
        "b1": jnp.asarray(params["b1"][None, :], jnp.float32),
        "w2": jnp.asarray(params["w2"].T, mm_dtype),
        "b2": jnp.asarray(params["b2"][None, :], jnp.float32),
        "w3": jnp.asarray(params["w3"].T, mm_dtype),
        "b3": jnp.asarray(params["b3"][None, :], jnp.float32),
    }


# ------------------------------- forward ------------------------------------ #
def discriminator_forward(attributeId, userEmb, kparams,
                          attrNum, attrPresentDim, userEmbDim, hiddenDim,
                          batch_tile=2048):
    """Pallas-backed forward pass mirroring PyTorch `discriminator.forward`."""
    matmul_dtype = kparams["w1"].dtype
    B = userEmb.shape[0]

    B8 = _round_up(B, 8)
    TB = min(batch_tile, B8)
    # v7x has 2 TensorCores: keep >= 2 grid steps whenever the batch allows so
    # dimension_semantics=("parallel",) actually occupies both cores.
    if B8 // TB < 2 and B8 >= 16:
        TB = _round_up(_cdiv(B8, 2), 8)
    B_pad = _round_up(B8, TB)
    grid = (B_pad // TB,)

    attributeId = attributeId.astype(jnp.int32)
    userEmb = userEmb.astype(matmul_dtype)
    if B_pad != B:
        attributeId = jnp.pad(attributeId, ((0, B_pad - B), (0, 0)))
        userEmb = jnp.pad(userEmb, ((0, B_pad - B), (0, 0)))

    oneHotDim = attrNum * 2 * attrNum
    k1 = oneHotDim + userEmbDim
    out_lanes = _round_up(2 * userEmbDim, 128)

    # Explicit VMEM budget: every (TB, n<128) block is lane-padded to 128.
    w_bytes = jnp.dtype(matmul_dtype).itemsize
    lane = lambda n: _round_up(n, 128)
    sub = lambda n: _round_up(n, 8)
    act_bytes = TB * (lane(attrNum) * 4 + lane(userEmbDim) * w_bytes
                      + out_lanes * 4)
    weight_bytes = (sub(k1) * lane(hiddenDim) * w_bytes
                    + sub(hiddenDim) * lane(hiddenDim) * w_bytes
                    + sub(hiddenDim) * lane(userEmbDim) * w_bytes
                    + 3 * 8 * 128 * 4)
    tmp_bytes = TB * (lane(k1) + 2 * lane(hiddenDim) + 3 * out_lanes) * 4
    vmem_limit = int(min(64 << 20,
                         max(32 << 20,
                             2 * (2 * act_bytes + 2 * weight_bytes + tmp_bytes))))

    def batch_spec(n):                                   # blocks that walk batch
        return pl.BlockSpec((TB, n), lambda i: (i, 0))

    def resident(shape):                                 # VMEM-resident weights
        return pl.BlockSpec(shape, lambda i: (0, 0))

    out = pl.pallas_call(
        functools.partial(_disc_kernel, matmul_dtype=matmul_dtype),
        out_shape=jax.ShapeDtypeStruct((B_pad, out_lanes), jnp.float32),
        grid=grid,
        in_specs=[
            batch_spec(attrNum),                         # attributeId [TB, A]
            batch_spec(userEmbDim),                      # userEmb     [TB, U]
            resident((k1, hiddenDim)),                   # [M1 ; W1_user]
            resident((1, hiddenDim)),                    # b1
            resident((hiddenDim, hiddenDim)),            # W2
            resident((1, hiddenDim)),                    # b2
            resident((hiddenDim, userEmbDim)),           # W3
            resident((1, userEmbDim)),                   # b3
        ],
        out_specs=batch_spec(out_lanes),
        compiler_params=pltpu.CompilerParams(
            dimension_semantics=("parallel",),           # megacore on v7x
            vmem_limit_bytes=vmem_limit),
    )(attributeId, userEmb, kparams["w1"], kparams["b1"],
      kparams["w2"], kparams["b2"], kparams["w3"], kparams["b3"])

    disRes = out[:B, :userEmbDim]
    disProb = out[:B, userEmbDim:2 * userEmbDim]
    return disProb, disRes


# -------------------------- parameter construction ------------------------- #
def xavier_uniform(key, shape):
    fan_out, fan_in = shape
    bound = jnp.sqrt(6.0 / (fan_in + fan_out))
    return jax.random.uniform(key, shape, jnp.float32, -bound, bound)


def init_params(key, attrNum, attrPresentDim, userEmbDim, hiddenDim):
    ks = jax.random.split(key, 7)
    in_dim = attrNum * attrPresentDim + userEmbDim
    return {
        # nn.Linear weights are [out, in]
        "w1": xavier_uniform(ks[0], (hiddenDim, in_dim)),
        "b1": jax.random.uniform(ks[1], (hiddenDim,), jnp.float32, -0.1, 0.1),
        "w2": xavier_uniform(ks[2], (hiddenDim, hiddenDim)),
        "b2": jax.random.uniform(ks[3], (hiddenDim,), jnp.float32, -0.1, 0.1),
        "w3": xavier_uniform(ks[4], (userEmbDim, hiddenDim)),
        "b3": jax.random.uniform(ks[5], (userEmbDim,), jnp.float32, -0.1, 0.1),
        # nn.Embedding weight [2*attrNum, attrPresentDim]
        "disAttrMat": xavier_uniform(ks[6], (2 * attrNum, attrPresentDim)),
    }


# ------------------------------ reference check ---------------------------- #
def reference_forward(attributeId, userEmb, params, attrNum, attrPresentDim):
    B = userEmb.shape[0]
    attrPresent = jnp.take(params["disAttrMat"], attributeId, axis=0)
    feature = attrPresent.reshape(B, attrNum * attrPresentDim)
    x = jnp.concatenate([feature, userEmb], axis=1)
    h1 = jnp.tanh(x @ params["w1"].T + params["b1"])
    h2 = jnp.tanh(h1 @ params["w2"].T + params["b2"])
    res = h2 @ params["w3"].T + params["b3"]
    return jax.nn.sigmoid(res), res


if __name__ == "__main__":
    attrNum, attrPresentDim, userEmbDim, hiddenDim = 4, 8, 32, 32
    B = 8

    key = jax.random.PRNGKey(0)
    k_params, k_attr, k_user = jax.random.split(key, 3)

    params = init_params(k_params, attrNum, attrPresentDim, userEmbDim, hiddenDim)
    attributeId = jax.random.randint(k_attr, (B, attrNum), 0, 2 * attrNum,
                                     dtype=jnp.int32)
    userEmb = jax.random.normal(k_user, (B, userEmbDim), dtype=jnp.float32)

    refProb, refRes = reference_forward(attributeId, userEmb, params,
                                        attrNum, attrPresentDim)

    # --- f32 path (tight check) ---
    kparams = prepare_kernel_params(params, attrNum, attrPresentDim,
                                    userEmbDim, hiddenDim, use_bf16=False)
    disProb, disRes = discriminator_forward(
        attributeId, userEmb, kparams,
        attrNum, attrPresentDim, userEmbDim, hiddenDim)
    jax.block_until_ready((disProb, disRes))

    assert disRes.shape == (B, userEmbDim) and disProb.shape == (B, userEmbDim)
    assert jnp.allclose(disRes, refRes, atol=1e-4, rtol=1e-4), \
        float(jnp.max(jnp.abs(disRes - refRes)))
    assert jnp.allclose(disProb, refProb, atol=1e-4, rtol=1e-4), \
        float(jnp.max(jnp.abs(disProb - refProb)))

    # --- bf16-matmul-operand path (v6e/v7x free win; looser tolerance) ---
    kparams_bf = prepare_kernel_params(params, attrNum, attrPresentDim,
                                       userEmbDim, hiddenDim, use_bf16=True)
    bfProb, bfRes = discriminator_forward(
        attributeId, userEmb, kparams_bf,
        attrNum, attrPresentDim, userEmbDim, hiddenDim)
    jax.block_until_ready((bfProb, bfRes))

    assert jnp.allclose(bfRes, refRes, atol=5e-2, rtol=5e-2), \
        float(jnp.max(jnp.abs(bfRes - refRes)))
    assert jnp.allclose(bfProb, refProb, atol=5e-2), \
        float(jnp.max(jnp.abs(bfProb - refProb)))

    print("KERNEL_OK")
</pallas_src>

<mosaic_0001>
module attributes {stable_mosaic.version = 11 : i64} {
  func.func @_disc_kernel(%arg0: i32, %arg1: memref<8x4xi32, #tpu.memory_space<vmem>>, %arg2: memref<8x32xf32, #tpu.memory_space<vmem>>, %arg3: memref<64x32xf32, #tpu.memory_space<vmem>>, %arg4: memref<1x32xf32, #tpu.memory_space<vmem>>, %arg5: memref<32x32xf32, #tpu.memory_space<vmem>>, %arg6: memref<1x32xf32, #tpu.memory_space<vmem>>, %arg7: memref<32x32xf32, #tpu.memory_space<vmem>>, %arg8: memref<1x32xf32, #tpu.memory_space<vmem>>, %arg9: memref<8x128xf32, #tpu.memory_space<vmem>>) attributes {dimension_semantics = [#tpu.dimension_semantics<parallel>], iteration_bounds = array<i64: 1>, scalar_prefetch = 0 : i64, scratch_operands = 0 : i64, tpu.core_type = #tpu.core_type<tc>, window_params = [{transform_indices = @transform_0, window_bounds = array<i64: 8, 4>}, {transform_indices = @transform_1, window_bounds = array<i64: 8, 32>}, {pipeline_mode = #tpu.pipeline_mode<synchronous>, transform_indices = @transform_2, window_bounds = array<i64: 64, 32>}, {pipeline_mode = #tpu.pipeline_mode<synchronous>, transform_indices = @transform_3, window_bounds = array<i64: 1, 32>}, {pipeline_mode = #tpu.pipeline_mode<synchronous>, transform_indices = @transform_4, window_bounds = array<i64: 32, 32>}, {pipeline_mode = #tpu.pipeline_mode<synchronous>, transform_indices = @transform_5, window_bounds = array<i64: 1, 32>}, {pipeline_mode = #tpu.pipeline_mode<synchronous>, transform_indices = @transform_6, window_bounds = array<i64: 32, 32>}, {pipeline_mode = #tpu.pipeline_mode<synchronous>, transform_indices = @transform_7, window_bounds = array<i64: 1, 32>}, {transform_indices = @transform_8, window_bounds = array<i64: 8, 128>}]} {
    %c0 = arith.constant 0 : index
    %c0_0 = arith.constant 0 : index
    %0 = vector.load %arg1[%c0, %c0_0] : memref<8x4xi32, #tpu.memory_space<vmem>>, vector<8x4xi32>
    %1 = tpu.iota {dimensions = array<i32: 1>} : vector<8x32xi32>
    %cst = arith.constant 0.000000e+00 : f32
    %2 = vector.broadcast %cst : f32 to vector<8x32xf32>
    %3 = vector.extract_strided_slice %0 {offsets = [0, 0], sizes = [8, 1], strides = [1, 1]} : vector<8x4xi32> to vector<8x1xi32>
    %c0_i32 = arith.constant 0 : i32
    %4 = vector.broadcast %c0_i32 : i32 to vector<8x1xi32>
    %5 = arith.addi %3, %4 : vector<8x1xi32>
    %6 = vector.broadcast %5 : vector<8x1xi32> to vector<8x32xi32>
    %7 = arith.cmpi eq, %1, %6 : vector<8x32xi32>
    %8 = arith.extui %7 : vector<8x32xi1> to vector<8x32xi32>
    %9 = arith.sitofp %8 : vector<8x32xi32> to vector<8x32xf32>
    %10 = arith.addf %2, %9 : vector<8x32xf32>
    %11 = vector.extract_strided_slice %0 {offsets = [0, 1], sizes = [8, 1], strides = [1, 1]} : vector<8x4xi32> to vector<8x1xi32>
    %c8_i32 = arith.constant 8 : i32
    %12 = vector.broadcast %c8_i32 : i32 to vector<8x1xi32>
    %13 = arith.addi %11, %12 : vector<8x1xi32>
    %14 = vector.broadcast %13 : vector<8x1xi32> to vector<8x32xi32>
    %15 = arith.cmpi eq, %1, %14 : vector<8x32xi32>
    %16 = arith.extui %15 : vector<8x32xi1> to vector<8x32xi32>
    %17 = arith.sitofp %16 : vector<8x32xi32> to vector<8x32xf32>
    %18 = arith.addf %10, %17 : vector<8x32xf32>
    %19 = vector.extract_strided_slice %0 {offsets = [0, 2], sizes = [8, 1], strides = [1, 1]} : vector<8x4xi32> to vector<8x1xi32>
    %c16_i32 = arith.constant 16 : i32
    %20 = vector.broadcast %c16_i32 : i32 to vector<8x1xi32>
    %21 = arith.addi %19, %20 : vector<8x1xi32>
    %22 = vector.broadcast %21 : vector<8x1xi32> to vector<8x32xi32>
    %23 = arith.cmpi eq, %1, %22 : vector<8x32xi32>
    %24 = arith.extui %23 : vector<8x32xi1> to vector<8x32xi32>
    %25 = arith.sitofp %24 : vector<8x32xi32> to vector<8x32xf32>
    %26 = arith.addf %18, %25 : vector<8x32xf32>
    %27 = vector.extract_strided_slice %0 {offsets = [0, 3], sizes = [8, 1], strides = [1, 1]} : vector<8x4xi32> to vector<8x1xi32>
    %c24_i32 = arith.constant 24 : i32
    %28 = vector.broadcast %c24_i32 : i32 to vector<8x1xi32>
    %29 = arith.addi %27, %28 : vector<8x1xi32>
    %30 = vector.broadcast %29 : vector<8x1xi32> to vector<8x32xi32>
    %31 = arith.cmpi eq, %1, %30 : vector<8x32xi32>
    %32 = arith.extui %31 : vector<8x32xi1> to vector<8x32xi32>
    %33 = arith.sitofp %32 : vector<8x32xi32> to vector<8x32xf32>
    %34 = arith.addf %26, %33 : vector<8x32xf32>
    %c0_1 = arith.constant 0 : index
    %c0_2 = arith.constant 0 : index
    %35 = vector.load %arg2[%c0_1, %c0_2] : memref<8x32xf32, #tpu.memory_space<vmem>>, vector<8x32xf32>
    %36 = tpu.concatenate %34, %35 in 1 : vector<8x32xf32>, vector<8x32xf32> -> vector<8x64xf32>
    %c0_3 = arith.constant 0 : index
    %c0_4 = arith.constant 0 : index
    %37 = vector.load %arg3[%c0_3, %c0_4] : memref<64x32xf32, #tpu.memory_space<vmem>>, vector<64x32xf32>
    %cst_5 = arith.constant dense<0.000000e+00> : vector<8x32xf32>
    %38 = tpu.matmul %36, %37, %cst_5 {dimension_numbers = #tpu.dot_dimension_numbers<[1], [0], [0], [1], [0, 0, 1, 1], [], []>} : vector<8x64xf32>, vector<64x32xf32>, vector<8x32xf32> -> vector<8x32xf32>
    %c0_6 = arith.constant 0 : index
    %c0_7 = arith.constant 0 : index
    %39 = vector.load %arg4[%c0_6, %c0_7] : memref<1x32xf32, #tpu.memory_space<vmem>>, vector<1x32xf32>
    %40 = vector.broadcast %39 : vector<1x32xf32> to vector<8x32xf32>
    %41 = arith.addf %38, %40 : vector<8x32xf32>
    %42 = math.tanh %41 : vector<8x32xf32>
    %c0_8 = arith.constant 0 : index
    %c0_9 = arith.constant 0 : index
    %43 = vector.load %arg5[%c0_8, %c0_9] : memref<32x32xf32, #tpu.memory_space<vmem>>, vector<32x32xf32>
    %cst_10 = arith.constant dense<0.000000e+00> : vector<8x32xf32>
    %44 = tpu.matmul %42, %43, %cst_10 {dimension_numbers = #tpu.dot_dimension_numbers<[1], [0], [0], [1], [0, 0, 1, 1], [], []>} : vector<8x32xf32>, vector<32x32xf32>, vector<8x32xf32> -> vector<8x32xf32>
    %c0_11 = arith.constant 0 : index
    %c0_12 = arith.constant 0 : index
    %45 = vector.load %arg6[%c0_11, %c0_12] : memref<1x32xf32, #tpu.memory_space<vmem>>, vector<1x32xf32>
    %46 = vector.broadcast %45 : vector<1x32xf32> to vector<8x32xf32>
    %47 = arith.addf %44, %46 : vector<8x32xf32>
    %48 = math.tanh %47 : vector<8x32xf32>
    %c0_13 = arith.constant 0 : index
    %c0_14 = arith.constant 0 : index
    %49 = vector.load %arg7[%c0_13, %c0_14] : memref<32x32xf32, #tpu.memory_space<vmem>>, vector<32x32xf32>
    %cst_15 = arith.constant dense<0.000000e+00> : vector<8x32xf32>
    %50 = tpu.matmul %48, %49, %cst_15 {dimension_numbers = #tpu.dot_dimension_numbers<[1], [0], [0], [1], [0, 0, 1, 1], [], []>} : vector<8x32xf32>, vector<32x32xf32>, vector<8x32xf32> -> vector<8x32xf32>
    %c0_16 = arith.constant 0 : index
    %c0_17 = arith.constant 0 : index
    %51 = vector.load %arg8[%c0_16, %c0_17] : memref<1x32xf32, #tpu.memory_space<vmem>>, vector<1x32xf32>
    %52 = vector.broadcast %51 : vector<1x32xf32> to vector<8x32xf32>
    %53 = arith.addf %50, %52 : vector<8x32xf32>
    %cst_18 = arith.constant 5.000000e-01 : f32
    %54 = vector.broadcast %cst_18 : f32 to vector<8x32xf32>
    %55 = arith.mulf %54, %53 : vector<8x32xf32>
    %56 = math.tanh %55 : vector<8x32xf32>
    %cst_19 = arith.constant 5.000000e-01 : f32
    %57 = vector.broadcast %cst_19 : f32 to vector<8x32xf32>
    %58 = arith.mulf %57, %56 : vector<8x32xf32>
    %cst_20 = arith.constant 5.000000e-01 : f32
    %59 = vector.broadcast %cst_20 : f32 to vector<8x32xf32>
    %60 = arith.addf %58, %59 : vector<8x32xf32>
    %61 = tpu.concatenate %53, %60 in 1 : vector<8x32xf32>, vector<8x32xf32> -> vector<8x64xf32>
    %cst_21 = arith.constant 0.000000e+00 : f32
    %62 = vector.broadcast %cst_21 : f32 to vector<8x64xf32>
    %63 = tpu.concatenate %61, %62 in 1 : vector<8x64xf32>, vector<8x64xf32> -> vector<8x128xf32>
    %c0_22 = arith.constant 0 : index
    %c0_23 = arith.constant 0 : index
    %64 = vector.load %arg9[%c0_22, %c0_23] : memref<8x128xf32, #tpu.memory_space<vmem>>, vector<8x128xf32>
    tpu.vector_store %arg9[%c0_22, %c0_23], %63 {strides = array<i32>} : memref<8x128xf32, #tpu.memory_space<vmem>>, vector<8x128xf32>,
    return
  }
  func.func @transform_0(%arg0: i32) -> (i32, i32) {
    %c0_i32 = arith.constant 0 : i32
    %c0_i32_0 = arith.constant 0 : i32
    return %arg0, %c0_i32 : i32, i32
  }
  func.func @transform_1(%arg0: i32) -> (i32, i32) {
    %c0_i32 = arith.constant 0 : i32
    %c0_i32_0 = arith.constant 0 : i32
    return %arg0, %c0_i32 : i32, i32
  }
  func.func @transform_2(%arg0: i32) -> (i32, i32) {
    %c0_i32 = arith.constant 0 : i32
    %c0_i32_0 = arith.constant 0 : i32
    %c0_i32_1 = arith.constant 0 : i32
    return %c0_i32, %c0_i32_0 : i32, i32
  }
  func.func @transform_3(%arg0: i32) -> (i32, i32) {
    %c0_i32 = arith.constant 0 : i32
    %c0_i32_0 = arith.constant 0 : i32
    %c0_i32_1 = arith.constant 0 : i32
    return %c0_i32, %c0_i32_0 : i32, i32
  }
  func.func @transform_4(%arg0: i32) -> (i32, i32) {
    %c0_i32 = arith.constant 0 : i32
    %c0_i32_0 = arith.constant 0 : i32
    %c0_i32_1 = arith.constant 0 : i32
    return %c0_i32, %c0_i32_0 : i32, i32
  }
  func.func @transform_5(%arg0: i32) -> (i32, i32) {
    %c0_i32 = arith.constant 0 : i32
    %c0_i32_0 = arith.constant 0 : i32
    %c0_i32_1 = arith.constant 0 : i32
    return %c0_i32, %c0_i32_0 : i32, i32
  }
  func.func @transform_6(%arg0: i32) -> (i32, i32) {
    %c0_i32 = arith.constant 0 : i32
    %c0_i32_0 = arith.constant 0 : i32
    %c0_i32_1 = arith.constant 0 : i32
    return %c0_i32, %c0_i32_0 : i32, i32
  }
  func.func @transform_7(%arg0: i32) -> (i32, i32) {
    %c0_i32 = arith.constant 0 : i32
    %c0_i32_0 = arith.constant 0 : i32
    %c0_i32_1 = arith.constant 0 : i32
    return %c0_i32, %c0_i32_0 : i32, i32
  }
  func.func @transform_8(%arg0: i32) -> (i32, i32) {
    %c0_i32 = arith.constant 0 : i32
    %c0_i32_0 = arith.constant 0 : i32
    return %arg0, %c0_i32 : i32, i32
  }
}

</mosaic_0001>

<llo_original>
// kernel: tpu_custom_call.1
$region0: #{tpu_custom_call.1}
  #allocation0 [shape = 'u32[]', space=smem, size = 0x4, offset = 0x4, fixed_abs, tag = 'smem constant byte address 0x4 - core index']
  #allocation1 [shape = 'u32[72,128]{1,0:T(1,128)}', space=vmem, size = 0x9000, scoped, tag = 'internal scratch']
  %s0 = inlined_call_operand.vmem [shape: s32[8,4], index: 0, kind: input, shape index: {}]
  %s1 = inlined_call_operand.vmem [shape: f32[8,32], index: 1, kind: input, shape index: {}]
  %s2 = inlined_call_operand.vmem [shape: f32[64,32], index: 2, kind: input, shape index: {}]
  %s3 = inlined_call_operand.vmem [shape: f32[1,32], index: 3, kind: input, shape index: {}]
  %s4 = inlined_call_operand.vmem [shape: f32[32,32], index: 4, kind: input, shape index: {}]
  %s5 = inlined_call_operand.vmem [shape: f32[1,32], index: 5, kind: input, shape index: {}]
  %s6 = inlined_call_operand.vmem [shape: f32[32,32], index: 6, kind: input, shape index: {}]
  %s7 = inlined_call_operand.vmem [shape: f32[1,32], index: 7, kind: input, shape index: {}]
  %s8 = inlined_call_operand.hbm [shape: f32[8,128], index: 8, kind: output, shape index: {}]
  %s9 = sld [smem:[#allocation0]]
  $region42: #{tpu_custom_call.1} parent=0
    _
  %s11 = ssub.s32 1, %s9
  %s12 = scalar_select 0, %s11, %s9
  $region1: #{tpu_custom_call.1} parent=0
    #allocation2 [shape = 'u8[4096]{0}', space=vmem, size = 0x1000, scoped, tag = 'output window, operand 0, single buffered']
    #allocation3 [shape = 's32[1]{0}', space=sflag, size = 0x4, scoped, tag = 'scoped memory for tpu_custom_call.1']
    %13 = vsyncpa [#allocation3], 0
    // Predicated region
    $region2: #{tpu_custom_call.1} parent=1 // pred_check
      _
    $region3: #{tpu_custom_call.1} parent=1 // pred_check_branch
      %15 = sbr.rel (0) target = $region5
    $region4: #{tpu_custom_call.1} parent=1 // pred_region
      _
    $region5: #{tpu_custom_call.1} parent=1 // pred_fallthru
      _
    // Predicated region
    $region6: #{tpu_custom_call.1} parent=1 // pred_check
      _
    $region7: #{tpu_custom_call.1} parent=1 // pred_check_branch
      %17 = sbr.rel (0) target = $region9
    $region8: #{tpu_custom_call.1} parent=1 // pred_region
      _
    $region9: #{tpu_custom_call.1} parent=1 // pred_fallthru
      _
    // Predicated region
    $region10: #{tpu_custom_call.1} parent=1 // pred_check
      _
    $region11: #{tpu_custom_call.1} parent=1 // pred_check_branch
      %19 = sbr.rel (0) target = $region13
    $region12: #{tpu_custom_call.1} parent=1 // pred_region
      _
    $region13: #{tpu_custom_call.1} parent=1 // pred_fallthru
      _
    // Predicated region
    $region14: #{tpu_custom_call.1} parent=1 // pred_check
      _
    $region15: #{tpu_custom_call.1} parent=1 // pred_check_branch
      %21 = sbr.rel (0) target = $region17
    $region16: #{tpu_custom_call.1} parent=1 // pred_region
      _
    $region17: #{tpu_custom_call.1} parent=1 // pred_fallthru
      _
    // Predicated region
    $region18: #{tpu_custom_call.1} parent=1 // pred_check
      _
    $region19: #{tpu_custom_call.1} parent=1 // pred_check_branch
      %23 = sbr.rel (0) target = $region21
    $region20: #{tpu_custom_call.1} parent=1 // pred_region
      _
    $region21: #{tpu_custom_call.1} parent=1 // pred_fallthru
      _
    // Predicated region
    $region22: #{tpu_custom_call.1} parent=1 // pred_check
      _
    $region23: #{tpu_custom_call.1} parent=1 // pred_check_branch
      %25 = sbr.rel (0) target = $region25
    $region24: #{tpu_custom_call.1} parent=1 // pred_region
      _
    $region25: #{tpu_custom_call.1} parent=1 // pred_fallthru
      _
    // Predicated region
    $region26: #{tpu_custom_call.1} parent=1 // pred_check
      _
    $region27: #{tpu_custom_call.1} parent=1 // pred_check_branch
      %27 = sbr.rel (0) target = $region29
    $region28: #{tpu_custom_call.1} parent=1 // pred_region
      _
    $region29: #{tpu_custom_call.1} parent=1 // pred_fallthru
      _
    // Predicated region
    $region30: #{tpu_custom_call.1} parent=1 // pred_check
      _
    $region31: #{tpu_custom_call.1} parent=1 // pred_check_branch
      %29 = sbr.rel (0) target = $region33
    $region32: #{tpu_custom_call.1} parent=1 // pred_region
      _
    $region33: #{tpu_custom_call.1} parent=1 // pred_fallthru
      _
    %v30 = vld [vmem:[%s0] sm:$0xff]
    %v31 = vlaneseq
    %v32 = vand.u32 %v31, 127
    %33 = vset.pattern.permute.xlu0 0
    %34 = vperm.xlu0 %33, %v30
    %v35 = vpop.permute.xlu0 %34
    %vm36 = vcmp.eq.s32.totalorder %v32, %v35
    %v37 = vsel %vm36, 1, 0
    %v38 = vcvt.s32.f32 %v37
    %v39 = vadd.f32 %v38, 0.0
    %v40 = vadd.s32 %v30, 8
    %41 = vset.pattern.permute.xlu0 1
    %42 = vperm.xlu0 %41, %v40
    %v43 = vpop.permute.xlu0 %42
    %vm44 = vcmp.eq.s32.totalorder %v32, %v43
    %v45 = vsel %vm44, 1, 0
    %v46 = vcvt.s32.f32 %v45
    %v47 = vadd.f32 %v39, %v46
    %v48 = vadd.s32 %v30, 16
    %49 = vset.pattern.permute.xlu0 2
    %50 = vperm.xlu0 %49, %v48
    %v51 = vpop.permute.xlu0 %50
    %vm52 = vcmp.eq.s32.totalorder %v32, %v51
    %v53 = vsel %vm52, 1, 0
    %v54 = vcvt.s32.f32 %v53
    %v55 = vadd.f32 %v47, %v54
    %v56 = vadd.s32 %v30, 24
    %57 = vset.pattern.permute.xlu0 3
    %58 = vperm.xlu0 %57, %v56
    %v59 = vpop.permute.xlu0 %58
    %vm60 = vcmp.eq.s32.totalorder %v32, %v59
    %v61 = vsel %vm60, 1, 0
    %v62 = vcvt.s32.f32 %v61
    %v63 = vadd.f32 %v55, %v62
    %v64 = vld [vmem:[%s1] sm:$0xff]
    %66 = vrot.lane.b32.xlu0 %v64, 32
    %v67 = vpop.permute.xlu0 %66
    %vm69 = vcmask 261120
    %v70 = vsel %vm69, %v63, %v67
    %v71 = vld [vmem:[%s2] sm:$0xff]
    %v72 = vld [vmem:[%s2 + $0x8] sm:$0xff]
    %v73 = vld [vmem:[%s2 + $0x10] sm:$0xff]
    %v74 = vld [vmem:[%s2 + $0x18] sm:$0xff]
    %v75 = vld [vmem:[%s2 + $0x20] sm:$0xff]
    %v76 = vld [vmem:[%s2 + $0x28] sm:$0xff]
    %v77 = vld [vmem:[%s2 + $0x30] sm:$0xff]
    %v78 = vld [vmem:[%s2 + $0x38] sm:$0xff]
    %v79 = vld [vmem:[%s3] sm:$0x1]
    %v81 = vperm.slane %v79, 0
    %vm83 = vcmask 523264
    %v85 = vsel %vm83, %v70, 0
    %87 = vmatpush.msra.mxu0 0.0
    %88 = vmatpush.msra.mxu0 0.0
    %89 = vmatpush.msra.mxu0 0.0
    %90 = vmatpush.msra.mxu0 0.0
    %91 = vmatpush.msra.mxu0 0.0
    %92 = vmatpush.msra.mxu0 0.0
    %93 = vmatpush.msra.mxu0 0.0
    %94 = vmatpush.msra.mxu0 0.0
    %95 = vmatpush.msra.mxu0 %v78
    %96 = vmatpush.msra.mxu0 %v77
    %97 = vmatpush.msra.mxu0 %v76
    %98 = vmatpush.msra.mxu0 %v75
    %99 = vmatpush.msra.mxu0 %v74
    %100 = vmatpush.msra.mxu0 %v73
    %101 = vmatpush.msra.mxu0 %v72
    %102 = vmatpush.msra.mxu0 %v71
    %103 = vmatmul.f32.gmra.mxu0 %v85
    %v104 = vpop.f32.mrf.mxu0
    %v105 = vadd.f32 %v81, %v104
    %106 = vdwg.mxu0
    %v107 = vtanh.pop %v105
    %v108 = vld [vmem:[%s4] sm:$0xff]
    %v109 = vld [vmem:[%s4 + $0x8] sm:$0xff]
    %v110 = vld [vmem:[%s4 + $0x10] sm:$0xff]
    %v111 = vld [vmem:[%s4 + $0x18] sm:$0xff]
    %v112 = vld [vmem:[%s5] sm:$0x1]
    %v114 = vperm.slane %v112, 0
    %v117 = vsel %vm69, %v107, 0
    %119 = vmatpush.msra.mxu0 0.0
    %120 = vmatpush.msra.mxu0 0.0
    %121 = vmatpush.msra.mxu0 0.0
    %122 = vmatpush.msra.mxu0 0.0
    %123 = vmatpush.msra.mxu0 0.0
    %124 = vmatpush.msra.mxu0 0.0
    %125 = vmatpush.msra.mxu0 0.0
    %126 = vmatpush.msra.mxu0 0.0
    %127 = vmatpush.msra.mxu0 0.0
    %128 = vmatpush.msra.mxu0 0.0
    %129 = vmatpush.msra.mxu0 0.0
    %130 = vmatpush.msra.mxu0 0.0
    %131 = vmatpush.msra.mxu0 %v111
    %132 = vmatpush.msra.mxu0 %v110
    %133 = vmatpush.msra.mxu0 %v109
    %134 = vmatpush.msra.mxu0 %v108
    %135 = vmatmul.f32.gmra.mxu0 %v117
    %v136 = vpop.f32.mrf.mxu0
    %v137 = vadd.f32 %v114, %v136
    %138 = vdwg.mxu0
    %v139 = vtanh.pop %v137
    %v140 = vld [vmem:[%s6] sm:$0xff]
    %v141 = vld [vmem:[%s6 + $0x8] sm:$0xff]
    %v142 = vld [vmem:[%s6 + $0x10] sm:$0xff]
    %v143 = vld [vmem:[%s6 + $0x18] sm:$0xff]
    %v144 = vld [vmem:[%s7] sm:$0x1]
    %v146 = vperm.slane %v144, 0
    %v149 = vsel %vm69, %v139, 0
    %151 = vmatpush.msra.mxu0 0.0
    %152 = vmatpush.msra.mxu0 0.0
    %153 = vmatpush.msra.mxu0 0.0
    %154 = vmatpush.msra.mxu0 0.0
    %155 = vmatpush.msra.mxu0 0.0
    %156 = vmatpush.msra.mxu0 0.0
    %157 = vmatpush.msra.mxu0 0.0
    %158 = vmatpush.msra.mxu0 0.0
    %159 = vmatpush.msra.mxu0 0.0
    %160 = vmatpush.msra.mxu0 0.0
    %161 = vmatpush.msra.mxu0 0.0
    %162 = vmatpush.msra.mxu0 0.0
    %163 = vmatpush.msra.mxu0 %v143
    %164 = vmatpush.msra.mxu0 %v142
    %165 = vmatpush.msra.mxu0 %v141
    %166 = vmatpush.msra.mxu0 %v140
    %167 = vmatmul.f32.gmra.mxu0 %v149
    %v168 = vpop.f32.mrf.mxu0
    %v169 = vadd.f32 %v146, %v168
    %170 = vdwg.mxu0
    %v171 = vmul.f32 %v169, 0.5
    %v172 = vtanh.pop %v171
    %v173 = vmul.f32 %v172, 0.5
    %v174 = vadd.f32 %v173, 0.5
    %176 = vrot.lane.b32.xlu0 %v174, 32
    %v177 = vpop.permute.xlu0 %176
    %v179 = vsel %vm69, %v169, %v177
    %v180 = vsel %vm83, %v179, 0.0
    %181 = vst [vmem:[#allocation2] sm:$0xff] %v180
    // Predicated region
    $region34: #{tpu_custom_call.1} parent=1 // pred_check
      _
    $region35: #{tpu_custom_call.1} parent=1 // pred_check_branch
      %183 = sbr.rel (0) target = $region37
    $region36: #{tpu_custom_call.1} parent=1 // pred_region
      %185 = vsyncadd [#allocation3], 0
      %s187 = sshll.u32 [#allocation2], 4
      %s188 = int_to_ptr.vmem [resolvable:$true] %s187
      %s189 = sshll.u32 %s8, 4
      %s190 = int_to_ptr.hbm [resolvable:$true] %s189
      %192 = dma.vmem_to_hbm [thread:$0]  %s188, 128, %s190, [#allocation3]
    $region37: #{tpu_custom_call.1} parent=1 // pred_fallthru
      _
    // Predicated region
    $region38: #{tpu_custom_call.1} parent=1 // pred_check
      _
    $region39: #{tpu_custom_call.1} parent=1 // pred_check_branch
      %194 = sbr.rel (0) target = $region41
    $region40: #{tpu_custom_call.1} parent=1 // pred_region
      %196 = dma.done [#allocation3], 128
    $region41: #{tpu_custom_call.1} parent=1 // pred_fallthru
      _
    %197 = vsyncpa [#allocation3], 1

</llo_original>
